<compile_context>
chip_gen: v7x
topology: tpu7x:2x2x1
jax: 0.10.0
libtpu: 0.0.40
codegen_flags: <defaults>
</compile_context>

<pallas_src>
import math

import jax
import jax.numpy as jnp
from jax.experimental import pallas as pl
from jax.experimental.pallas import tpu as pltpu

PROJ_HIDDEN_DIM = 300
DIM1 = 8          # self.dim1 (== self.dim2)
NCLASS = 2
BN_EPS = 1e-5


def _round_up(x, m):
    return (x + m - 1) // m * m


def _pick_tm(batch, tm_max):
    """Batch tile size: multiple of 8 (f32 sublanes) unless it is the full batch."""
    if batch <= tm_max and batch <= 512:
        return batch                                    # single full-extent block
    if batch <= 2 * tm_max:
        # Form >= 2 blocks so the "parallel" batch axis can shard across the
        # two TensorCores on v7x (megacore); still a multiple of 8.
        return min(tm_max, _round_up(-(-batch // 2), 256))
    return tm_max


def classifier_kernel(z_ref, w1_ref, b1_ref, dw_ref, db_ref, out_ref):
    # fc1: (TM, 300) @ (300, 8).  z is streamed from HBM as f32 (no staging
    # copy in the wrapper); cast the tile to bf16 immediately before the MXU,
    # accumulate in f32.
    h = jnp.dot(z_ref[...].astype(jnp.bfloat16), w1_ref[...],
                preferred_element_type=jnp.float32)
    h = jnp.maximum(h + b1_ref[...], 0.0)                       # bias + ReLU
    # BatchNorm1d (eval, running stats) + fc3 are folded into dw/db (wrapper).
    # Dropout(p=0.5) is identity in eval mode.
    #
    # NCLASS == 2: log_softmax collapses to the logit delta
    #   d = logits[:, 1] - logits[:, 0]
    #   log_probs = [-softplus(d), d - softplus(d)]
    # keeping the epilogue on the VPU/EUP (no lane-sparse MXU pass, no 2-wide
    # lane max/sum on the XLU).
    d = jnp.sum(h * dw_ref[...], axis=-1, keepdims=True) + db_ref[...]     # (TM, 1)
    sp = jnp.maximum(d, 0.0) + jnp.log(1.0 + jnp.exp(-jnp.abs(d)))         # softplus(d)
    col = jax.lax.broadcasted_iota(jnp.int32, out_ref.shape, 1)
    out_ref[...] = jnp.where(col == 0, -sp, d - sp)


def classifier_forward(z, node_emb, params, *, tm=4096):
    """Runs the Classifier head on encoder output z; returns (log_probs, node_emb).

    tm = max batch tile size.  At tm=4096 the double-buffered f32 z block is
    ~9.4 MiB, the lane-padded (TM,128) output buffers ~4 MiB, plus a few MiB of
    lane-padded temporaries — comfortably inside v7x's 64 MiB/TC and the limit
    set below on v5e/v6e.  v6e can pass tm=8192; v5e may prefer tm=2048.
    """
    B, K = z.shape
    assert K == PROJ_HIDDEN_DIM

    # ---- wrapper-time algebra (tiny ops, fused by XLA) -----------------------
    # bn(x) = x*scale + shift, scale = gamma/sqrt(var+eps), shift = beta - mean*scale
    # logits = bn(relu) @ w3 + b3 = relu @ (scale[:,None]*w3) + (shift @ w3 + b3)
    scale = params["bn_gamma"] * jax.lax.rsqrt(params["bn_var"] + BN_EPS)   # (1, 8)
    shift = params["bn_beta"] - params["bn_mean"] * scale                   # (1, 8)
    w3_eff = scale.reshape(DIM1, 1) * params["w3_t"]                        # (8, 2)
    b3_eff = params["b3"] + shift @ params["w3_t"]                          # (1, 2)
    # nclass == 2: only the logit difference matters for log_softmax.
    dw = (w3_eff[:, 1] - w3_eff[:, 0]).reshape(1, DIM1)                     # (1, 8)
    db = (b3_eff[:, 1] - b3_eff[:, 0]).reshape(1, 1)                        # (1, 1)
    w1_bf = params["w1_t"].astype(jnp.bfloat16)                             # (300, 8), tiny

    # z goes straight in as f32: the head is HBM-bound on reading z, so a
    # wrapper-side bf16/pad recast would only add traffic.  No batch padding:
    # the last grid block may be partial (OOB rows masked on store).
    TM = _pick_tm(B, tm)
    grid = (pl.cdiv(B, TM),)

    out = pl.pallas_call(
        classifier_kernel,
        out_shape=jax.ShapeDtypeStruct((B, NCLASS), jnp.float32),
        grid=grid,
        in_specs=[
            pl.BlockSpec((TM, PROJ_HIDDEN_DIM), lambda i: (i, 0)),   # z: streamed per tile
            pl.BlockSpec((PROJ_HIDDEN_DIM, DIM1), lambda i: (0, 0)), # fc1 weight: resident
            pl.BlockSpec((1, DIM1), lambda i: (0, 0)),               # fc1 bias
            pl.BlockSpec((1, DIM1), lambda i: (0, 0)),               # folded logit-delta w
            pl.BlockSpec((1, 1), lambda i: (0, 0)),                  # folded logit-delta b
        ],
        # NOTE: the (TM, 2) f32 output block is lane-padded to (TM, 128) in
        # VMEM (~2 MiB per buffer at TM=4096); included in the budget above.
        out_specs=pl.BlockSpec((TM, NCLASS), lambda i: (i, 0)),
        compiler_params=pltpu.CompilerParams(
            dimension_semantics=("parallel",),
            vmem_limit_bytes=64 * 1024 * 1024),
    )(z, w1_bf, params["b1"], dw, db)
    return out, node_emb


def xavier_uniform(key, fan_out, fan_in):
    bound = math.sqrt(6.0 / (fan_in + fan_out))
    # PyTorch stores Linear weight as [out, in]; we return it transposed [in, out].
    w = jax.random.uniform(key, (fan_out, fan_in), jnp.float32, -bound, bound)
    return w.T


def init_params(key):
    k1, k3 = jax.random.split(key)
    return {
        "w1_t": xavier_uniform(k1, DIM1, PROJ_HIDDEN_DIM),   # [300, 8]
        "b1": jnp.zeros((1, DIM1), jnp.float32),
        "bn_gamma": jnp.ones((1, DIM1), jnp.float32),
        "bn_beta": jnp.zeros((1, DIM1), jnp.float32),
        "bn_mean": jnp.zeros((1, DIM1), jnp.float32),
        "bn_var": jnp.ones((1, DIM1), jnp.float32),
        "w3_t": xavier_uniform(k3, NCLASS, DIM1),             # [8, 2]
        "b3": jnp.zeros((1, NCLASS), jnp.float32),
    }


def reference_forward(z, params, *, bf16_inputs=False):
    """Pure-JAX reference of the module's eval-mode forward (full BN path)."""
    w1 = params["w1_t"]
    if bf16_inputs:  # mirror the kernel's in-kernel bf16 cast of z / fc1 weight
        z = z.astype(jnp.bfloat16).astype(jnp.float32)
        w1 = w1.astype(jnp.bfloat16).astype(jnp.float32)
    h = jnp.maximum(z @ w1 + params["b1"], 0.0)
    h = (h - params["bn_mean"]) * jax.lax.rsqrt(params["bn_var"] + BN_EPS)
    h = h * params["bn_gamma"] + params["bn_beta"]
    logits = h @ params["w3_t"] + params["b3"]
    return jax.nn.log_softmax(logits, axis=-1)


def _check(log_probs, z, params):
    ref_bf16 = reference_forward(z, params, bf16_inputs=True)
    assert jnp.allclose(log_probs, ref_bf16, atol=1e-4, rtol=1e-4)
    ref_f32 = reference_forward(z, params)
    assert jnp.allclose(log_probs, ref_f32, atol=3e-2, rtol=3e-2)
    assert jnp.allclose(jnp.sum(jnp.exp(log_probs), axis=-1), 1.0, atol=1e-5)


if __name__ == "__main__":
    key = jax.random.PRNGKey(0)
    kz, kn, kp, kb, kc = jax.random.split(key, 5)

    B = 8                       # number of graphs in the batch
    N_NODES, NODE_DIM = 16, 32  # synthetic node embeddings (pass-through)

    z = jax.random.normal(kz, (B, PROJ_HIDDEN_DIM), jnp.float32)   # encoder graph emb
    node_emb = jax.random.normal(kn, (N_NODES, NODE_DIM), jnp.float32)
    params = init_params(kp)

    log_probs, node_emb_out = classifier_forward(z, node_emb, params)
    log_probs = jax.block_until_ready(log_probs)
    assert log_probs.shape == (B, NCLASS)
    assert node_emb_out is node_emb
    _check(log_probs, z, params)

    # Multi-tile grid with a partial last block (B=20, TM=8 -> grid=3, 4 live rows last).
    B2 = 20
    z2 = jax.random.normal(kb, (B2, PROJ_HIDDEN_DIM), jnp.float32)
    log_probs2, _ = classifier_forward(z2, node_emb, params, tm=8)
    log_probs2 = jax.block_until_ready(log_probs2)
    assert log_probs2.shape == (B2, NCLASS)
    _check(log_probs2, z2, params)

    # Mid-size batch exercising the >=2-block (megacore) tile selection (TM=512, grid=2).
    B3 = 600
    z3 = jax.random.normal(kc, (B3, PROJ_HIDDEN_DIM), jnp.float32)
    log_probs3, _ = classifier_forward(z3, node_emb, params)
    log_probs3 = jax.block_until_ready(log_probs3)
    assert log_probs3.shape == (B3, NCLASS)
    _check(log_probs3, z3, params)

    print("KERNEL_OK")
</pallas_src>

<mosaic_0001>
module attributes {stable_mosaic.version = 11 : i64} {
  func.func @classifier_kernel(%arg0: i32, %arg1: memref<8x300xf32, #tpu.memory_space<vmem>>, %arg2: memref<300x8xbf16, #tpu.memory_space<vmem>>, %arg3: memref<1x8xf32, #tpu.memory_space<vmem>>, %arg4: memref<1x8xf32, #tpu.memory_space<vmem>>, %arg5: memref<1x1xf32, #tpu.memory_space<vmem>>, %arg6: memref<8x2xf32, #tpu.memory_space<vmem>>) attributes {dimension_semantics = [#tpu.dimension_semantics<parallel>], iteration_bounds = array<i64: 1>, scalar_prefetch = 0 : i64, scratch_operands = 0 : i64, tpu.core_type = #tpu.core_type<tc>, window_params = [{transform_indices = @transform_0, window_bounds = array<i64: 8, 300>}, {pipeline_mode = #tpu.pipeline_mode<synchronous>, transform_indices = @transform_1, window_bounds = array<i64: 300, 8>}, {pipeline_mode = #tpu.pipeline_mode<synchronous>, transform_indices = @transform_2, window_bounds = array<i64: 1, 8>}, {pipeline_mode = #tpu.pipeline_mode<synchronous>, transform_indices = @transform_3, window_bounds = array<i64: 1, 8>}, {pipeline_mode = #tpu.pipeline_mode<synchronous>, transform_indices = @transform_4, window_bounds = array<i64: 1, 1>}, {transform_indices = @transform_5, window_bounds = array<i64: 8, 2>}]} {
    %c0 = arith.constant 0 : index
    %c0_0 = arith.constant 0 : index
    %0 = vector.load %arg1[%c0, %c0_0] : memref<8x300xf32, #tpu.memory_space<vmem>>, vector<8x300xf32>
    %1 = arith.truncf %0 : vector<8x300xf32> to vector<8x300xbf16>
    %c0_1 = arith.constant 0 : index
    %c0_2 = arith.constant 0 : index
    %2 = vector.load %arg2[%c0_1, %c0_2] : memref<300x8xbf16, #tpu.memory_space<vmem>>, vector<300x8xbf16>
    %cst = arith.constant dense<0.000000e+00> : vector<8x8xf32>
    %3 = tpu.matmul %1, %2, %cst {dimension_numbers = #tpu.dot_dimension_numbers<[1], [0], [0], [1], [0, 0, 1, 1], [], []>} : vector<8x300xbf16>, vector<300x8xbf16>, vector<8x8xf32> -> vector<8x8xf32>
    %c0_3 = arith.constant 0 : index
    %c0_4 = arith.constant 0 : index
    %4 = vector.load %arg3[%c0_3, %c0_4] : memref<1x8xf32, #tpu.memory_space<vmem>>, vector<1x8xf32>
    %5 = vector.broadcast %4 : vector<1x8xf32> to vector<8x8xf32>
    %6 = arith.addf %3, %5 : vector<8x8xf32>
    %cst_5 = arith.constant 0.000000e+00 : f32
    %7 = vector.broadcast %cst_5 : f32 to vector<8x8xf32>
    %8 = arith.maximumf %6, %7 : vector<8x8xf32>
    %c0_6 = arith.constant 0 : index
    %c0_7 = arith.constant 0 : index
    %9 = vector.load %arg4[%c0_6, %c0_7] : memref<1x8xf32, #tpu.memory_space<vmem>>, vector<1x8xf32>
    %10 = vector.broadcast %9 : vector<1x8xf32> to vector<8x8xf32>
    %11 = arith.mulf %8, %10 : vector<8x8xf32>
    %cst_8 = arith.constant dense<0.000000e+00> : vector<8xf32>
    %12 = vector.multi_reduction <add>, %11, %cst_8 [1] : vector<8x8xf32> to vector<8xf32>
    %13 = vector.shape_cast %12 : vector<8xf32> to vector<8x1xf32>
    %c0_9 = arith.constant 0 : index
    %c0_10 = arith.constant 0 : index
    %14 = vector.load %arg5[%c0_9, %c0_10] : memref<1x1xf32, #tpu.memory_space<vmem>>, vector<1x1xf32>
    %15 = vector.broadcast %14 : vector<1x1xf32> to vector<8x1xf32>
    %16 = arith.addf %13, %15 : vector<8x1xf32>
    %cst_11 = arith.constant 0.000000e+00 : f32
    %17 = vector.broadcast %cst_11 : f32 to vector<8x1xf32>
    %18 = arith.maximumf %16, %17 : vector<8x1xf32>
    %19 = math.absf %16 : vector<8x1xf32>
    %cst_12 = arith.constant 0.000000e+00 : f32
    %20 = vector.broadcast %cst_12 : f32 to vector<8x1xf32>
    %21 = arith.subf %20, %19 : vector<8x1xf32>
    %22 = math.exp %21 : vector<8x1xf32>
    %cst_13 = arith.constant 1.000000e+00 : f32
    %23 = vector.broadcast %cst_13 : f32 to vector<8x1xf32>
    %24 = arith.addf %23, %22 : vector<8x1xf32>
    %25 = math.log %24 : vector<8x1xf32>
    %26 = arith.addf %18, %25 : vector<8x1xf32>
    %27 = tpu.iota {dimensions = array<i32: 1>} : vector<8x2xi32>
    %c0_i32 = arith.constant 0 : i32
    %28 = vector.broadcast %c0_i32 : i32 to vector<8x2xi32>
    %29 = arith.cmpi eq, %27, %28 : vector<8x2xi32>
    %cst_14 = arith.constant 0.000000e+00 : f32
    %30 = vector.broadcast %cst_14 : f32 to vector<8x1xf32>
    %31 = arith.subf %30, %26 : vector<8x1xf32>
    %32 = arith.subf %16, %26 : vector<8x1xf32>
    %33 = vector.shape_cast %31 : vector<8x1xf32> to vector<8x1xf32>
    %34 = vector.broadcast %33 : vector<8x1xf32> to vector<8x2xf32>
    %35 = vector.shape_cast %32 : vector<8x1xf32> to vector<8x1xf32>
    %36 = vector.broadcast %35 : vector<8x1xf32> to vector<8x2xf32>
    %37 = arith.select %29, %34, %36 : vector<8x2xi1>, vector<8x2xf32>
    %c0_15 = arith.constant 0 : index
    %c0_16 = arith.constant 0 : index
    %38 = vector.load %arg6[%c0_15, %c0_16] : memref<8x2xf32, #tpu.memory_space<vmem>>, vector<8x2xf32>
    tpu.vector_store %arg6[%c0_15, %c0_16], %37 {strides = array<i32>} : memref<8x2xf32, #tpu.memory_space<vmem>>, vector<8x2xf32>,
    return
  }
  func.func @transform_0(%arg0: i32) -> (i32, i32) {
    %c0_i32 = arith.constant 0 : i32
    %c0_i32_0 = arith.constant 0 : i32
    return %arg0, %c0_i32 : i32, i32
  }
  func.func @transform_1(%arg0: i32) -> (i32, i32) {
    %c0_i32 = arith.constant 0 : i32
    %c0_i32_0 = arith.constant 0 : i32
    %c0_i32_1 = arith.constant 0 : i32
    return %c0_i32, %c0_i32_0 : i32, i32
  }
  func.func @transform_2(%arg0: i32) -> (i32, i32) {
    %c0_i32 = arith.constant 0 : i32
    %c0_i32_0 = arith.constant 0 : i32
    %c0_i32_1 = arith.constant 0 : i32
    return %c0_i32, %c0_i32_0 : i32, i32
  }
  func.func @transform_3(%arg0: i32) -> (i32, i32) {
    %c0_i32 = arith.constant 0 : i32
    %c0_i32_0 = arith.constant 0 : i32
    %c0_i32_1 = arith.constant 0 : i32
    return %c0_i32, %c0_i32_0 : i32, i32
  }
  func.func @transform_4(%arg0: i32) -> (i32, i32) {
    %c0_i32 = arith.constant 0 : i32
    %c0_i32_0 = arith.constant 0 : i32
    %c0_i32_1 = arith.constant 0 : i32
    return %c0_i32, %c0_i32_0 : i32, i32
  }
  func.func @transform_5(%arg0: i32) -> (i32, i32) {
    %c0_i32 = arith.constant 0 : i32
    %c0_i32_0 = arith.constant 0 : i32
    return %arg0, %c0_i32 : i32, i32
  }
}

</mosaic_0001>

<llo_original>
// kernel: tpu_custom_call.1
$region0: #{tpu_custom_call.1}
  #allocation0 [shape = 'u32[]', space=smem, size = 0x4, offset = 0x4, fixed_abs, tag = 'smem constant byte address 0x4 - core index']
  #allocation1 [shape = 'u32[144,128]{1,0:T(1,128)}', space=vmem, size = 0x12000, scoped, tag = 'internal scratch']
  #allocation2 [shape = 'f32[1,1]{1,0:T(1,128)S(1)}', space=vmem, size = 0x200, scoped, tag = 'scoped memory for tpu_custom_call.1']
  %s0 = inlined_call_operand.hbm [shape: f32[8,300], index: 0, kind: input, shape index: {}]
  %s1 = inlined_call_operand.hbm [shape: bf16[300,8], index: 1, kind: input, shape index: {}]
  %s2 = inlined_call_operand.hbm [shape: f32[1,8], index: 2, kind: input, shape index: {}]
  %s3 = inlined_call_operand.hbm [shape: f32[1,8], index: 3, kind: input, shape index: {}]
  %s4 = inlined_call_operand.<no memory space> [shape: f32[1,1], index: 4, kind: input, shape index: {}]
  %s5 = inlined_call_operand.hbm [shape: f32[8,2], index: 5, kind: output, shape index: {}]
  %s6 = sld [smem:[#allocation0]]
  $region46: #{tpu_custom_call.1} parent=0
    _
  %s8 = ssub.s32 1, %s6
  %s9 = scalar_select 0, %s8, %s6
  %v10 = vstv %s4
  %11 = vst [vmem:[#allocation2] sm:$0x1] %v10
  $region1: #{tpu_custom_call.1} parent=0
    #allocation3 [shape = 'u8[12288]{0}', space=vmem, size = 0x3000, scoped, tag = 'input window, operand 0, single buffered']
    #allocation4 [shape = 's32[1]{0}', space=sflag, size = 0x4, scoped, tag = 'scoped memory for tpu_custom_call.1']
    #allocation5 [shape = 's32[1]{0}', space=sflag, size = 0x4, scoped, tag = 'scoped memory for tpu_custom_call.1']
    #allocation6 [shape = 'u8[77824]{0}', space=vmem, size = 0x13000, scoped, tag = 'input window, operand 1, single buffered']
    #allocation7 [shape = 's32[1]{0}', space=sflag, size = 0x4, scoped, tag = 'scoped memory for tpu_custom_call.1']
    #allocation8 [shape = 'u8[512]{0}', space=vmem, size = 0x400, scoped, tag = 'input window, operand 2, single buffered']
    #allocation9 [shape = 'u8[512]{0}', space=vmem, size = 0x400, scoped, tag = 'input window, operand 3, single buffered']
    #allocation10 [shape = 's32[1]{0}', space=sflag, size = 0x4, scoped, tag = 'scoped memory for tpu_custom_call.1']
    #allocation11 [shape = 'u8[4096]{0}', space=vmem, size = 0x1000, scoped, tag = 'output window, operand 0, single buffered']
    %12 = vsyncpa [#allocation4], 0
    %13 = vsyncpa [#allocation7], 0
    %14 = vsyncpa [#allocation10], 0
    %15 = vsyncpa [#allocation5], 0
    // Predicated region
    $region2: #{tpu_custom_call.1} parent=1 // pred_check
      _
    $region3: #{tpu_custom_call.1} parent=1 // pred_check_branch
      %17 = sbr.rel (0) target = $region5
    $region4: #{tpu_custom_call.1} parent=1 // pred_region
      %s19 = ssub.s32 384, 384
      %20 = vsyncadd [#allocation4], %s19
      %s22 = sshll.u32 [#allocation3], 4
      %s23 = int_to_ptr.vmem [resolvable:$true] %s22
      %25 = dma.hbm_to_vmem [thread:$0]  %s0, 384, %s23, [#allocation4]
    $region5: #{tpu_custom_call.1} parent=1 // pred_fallthru
      _
    // Predicated region
    $region6: #{tpu_custom_call.1} parent=1 // pred_check
      _
    $region7: #{tpu_custom_call.1} parent=1 // pred_check_branch
      %27 = sbr.rel (0) target = $region9
    $region8: #{tpu_custom_call.1} parent=1 // pred_region
      %s29 = ssub.s32 2432, 2432
      %30 = vsyncadd [#allocation7], %s29
      %s31 = sshll.u32 [#allocation6], 4
      %s32 = int_to_ptr.vmem [resolvable:$true] %s31
      %37 = dma.hbm_to_vmem [thread:$0]  %s1, 2432, %s32, [#allocation7], 64, 64, 4
    $region9: #{tpu_custom_call.1} parent=1 // pred_fallthru
      _
    // Predicated region
    $region10: #{tpu_custom_call.1} parent=1 // pred_check
      _
    $region11: #{tpu_custom_call.1} parent=1 // pred_check_branch
      %39 = sbr.rel (0) target = $region13
    $region12: #{tpu_custom_call.1} parent=1 // pred_region
      %s41 = ssub.s32 16, 16
      %42 = vsyncadd [#allocation7], %s41
      %s44 = sshll.u32 [#allocation8], 4
      %s45 = int_to_ptr.vmem [resolvable:$true] %s44
      %47 = dma.hbm_to_vmem [thread:$0]  %s2, 16, %s45, [#allocation7]
    $region13: #{tpu_custom_call.1} parent=1 // pred_fallthru
      _
    // Predicated region
    $region14: #{tpu_custom_call.1} parent=1 // pred_check
      _
    $region15: #{tpu_custom_call.1} parent=1 // pred_check_branch
      %49 = sbr.rel (0) target = $region17
    $region16: #{tpu_custom_call.1} parent=1 // pred_region
      %s51 = ssub.s32 16, 16
      %52 = vsyncadd [#allocation10], %s51
      %s54 = sshll.u32 [#allocation9], 4
      %s55 = int_to_ptr.vmem [resolvable:$true] %s54
      %57 = dma.hbm_to_vmem [thread:$0]  %s3, 16, %s55, [#allocation10]
    $region17: #{tpu_custom_call.1} parent=1 // pred_fallthru
      _
    // Predicated region
    $region18: #{tpu_custom_call.1} parent=1 // pred_check
      _
    $region19: #{tpu_custom_call.1} parent=1 // pred_check_branch
      %59 = sbr.rel (0) target = $region21
    $region20: #{tpu_custom_call.1} parent=1 // pred_region
      _
    $region21: #{tpu_custom_call.1} parent=1 // pred_fallthru
      _
    // Predicated region
    $region22: #{tpu_custom_call.1} parent=1 // pred_check
      _
    $region23: #{tpu_custom_call.1} parent=1 // pred_check_branch
      %61 = sbr.rel (0) target = $region25
    $region24: #{tpu_custom_call.1} parent=1 // pred_region
      %62 = dma.done [#allocation4], 384
    $region25: #{tpu_custom_call.1} parent=1 // pred_fallthru
      _
    // Predicated region
    $region26: #{tpu_custom_call.1} parent=1 // pred_check
      _
    $region27: #{tpu_custom_call.1} parent=1 // pred_check_branch
      %64 = sbr.rel (0) target = $region29
    $region28: #{tpu_custom_call.1} parent=1 // pred_region
      %65 = dma.done [#allocation7], 2432
    $region29: #{tpu_custom_call.1} parent=1 // pred_fallthru
      _
    // Predicated region
    $region30: #{tpu_custom_call.1} parent=1 // pred_check
      _
    $region31: #{tpu_custom_call.1} parent=1 // pred_check_branch
      %67 = sbr.rel (0) target = $region33
    $region32: #{tpu_custom_call.1} parent=1 // pred_region
      %68 = dma.done [#allocation7], 16
    $region33: #{tpu_custom_call.1} parent=1 // pred_fallthru
      _
    // Predicated region
    $region34: #{tpu_custom_call.1} parent=1 // pred_check
      _
    $region35: #{tpu_custom_call.1} parent=1 // pred_check_branch
      %70 = sbr.rel (0) target = $region37
    $region36: #{tpu_custom_call.1} parent=1 // pred_region
      %71 = dma.done [#allocation10], 16
    $region37: #{tpu_custom_call.1} parent=1 // pred_fallthru
      _
    %v73 = vld [vmem:[#allocation3] sm:$0xff]
    %v74 = vld [vmem:[#allocation3 + $0x8] sm:$0xff]
    %v75 = vld [vmem:[#allocation3 + $0x10] sm:$0xff]
    %v76 = vpack.c.bf16 %v73, %v73
    %v77 = vpack.c.bf16 %v74, %v74
    %v78 = vpack.c.bf16 %v75, %v75
    %v79 = vld [vmem:[#allocation6] sm:$0xf]
    %v80 = vld [vmem:[#allocation6 + $0x4] sm:$0xf]
    %v81 = vld [vmem:[#allocation6 + $0x8] sm:$0xf]
    %v82 = vld [vmem:[#allocation6 + $0xc] sm:$0xf]
    %v83 = vld [vmem:[#allocation6 + $0x10] sm:$0xf]
    %v84 = vld [vmem:[#allocation6 + $0x14] sm:$0xf]
    %v85 = vld [vmem:[#allocation6 + $0x18] sm:$0xf]
    %v86 = vld [vmem:[#allocation6 + $0x1c] sm:$0xf]
    %v87 = vld [vmem:[#allocation6 + $0x20] sm:$0xf]
    %v88 = vld [vmem:[#allocation6 + $0x24] sm:$0xf]
    %v89 = vld [vmem:[#allocation6 + $0x28] sm:$0xf]
    %v90 = vld [vmem:[#allocation6 + $0x2c] sm:$0xf]
    %v91 = vld [vmem:[#allocation6 + $0x30] sm:$0xf]
    %v92 = vld [vmem:[#allocation6 + $0x34] sm:$0xf]
    %v93 = vld [vmem:[#allocation6 + $0x38] sm:$0xf]
    %v94 = vld [vmem:[#allocation6 + $0x3c] sm:$0xf]
    %v95 = vld [vmem:[#allocation6 + $0x40] sm:$0xf]
    %v96 = vld [vmem:[#allocation6 + $0x44] sm:$0xf]
    %v97 = vld [vmem:[#allocation6 + $0x48] sm:$0xf]
    %v98 = vld [vmem:[#allocation6 + $0x4c] sm:$0xf]
    %v99 = vld [vmem:[#allocation6 + $0x50] sm:$0xf]
    %v100 = vld [vmem:[#allocation6 + $0x54] sm:$0xf]
    %v101 = vld [vmem:[#allocation6 + $0x58] sm:$0xf]
    %v102 = vld [vmem:[#allocation6 + $0x5c] sm:$0xf]
    %v103 = vld [vmem:[#allocation6 + $0x60] sm:$0xf]
    %v104 = vld [vmem:[#allocation6 + $0x64] sm:$0xf]
    %v105 = vld [vmem:[#allocation6 + $0x68] sm:$0xf]
    %v106 = vld [vmem:[#allocation6 + $0x6c] sm:$0xf]
    %v107 = vld [vmem:[#allocation6 + $0x70] sm:$0xf]
    %v108 = vld [vmem:[#allocation6 + $0x74] sm:$0xf]
    %v109 = vld [vmem:[#allocation6 + $0x78] sm:$0xf]
    %v110 = vld [vmem:[#allocation6 + $0x7c] sm:$0xf]
    %v111 = vld [vmem:[#allocation6 + $0x80] sm:$0xf]
    %v112 = vld [vmem:[#allocation6 + $0x84] sm:$0xf]
    %v113 = vld [vmem:[#allocation6 + $0x88] sm:$0xf]
    %v114 = vld [vmem:[#allocation6 + $0x8c] sm:$0xf]
    %v115 = vld [vmem:[#allocation6 + $0x90] sm:$0xf]
    %v116 = vld [vmem:[#allocation6 + $0x94] sm:$0x3]
    %v117 = vld [vmem:[#allocation8] sm:$0x1]
    %v119 = vlaneseq
    %v120 = vshrl.u32 %v119, 7
    %v121 = vsub.s32 0, %v120
    %v122 = vrot.slane %v117, %v121
    %v162 = vunpack.c.l.b16 %v79
    %v163 = vunpack.c.l.b16 %v80
    %v164 = vunpack.c.l.b16 %v81
    %v165 = vunpack.c.l.b16 %v82
    %v166 = vunpack.c.l.b16 %v83
    %v167 = vunpack.c.l.b16 %v84
    %v168 = vunpack.c.l.b16 %v85
    %v169 = vunpack.c.l.b16 %v86
    %v170 = vunpack.c.l.b16 %v87
    %v171 = vunpack.c.l.b16 %v88
    %v172 = vunpack.c.l.b16 %v89
    %v173 = vunpack.c.l.b16 %v90
    %v174 = vunpack.c.l.b16 %v91
    %v175 = vunpack.c.l.b16 %v92
    %v176 = vunpack.c.l.b16 %v93
    %v177 = vunpack.c.l.b16 %v94
    %v178 = vunpack.c.l.b16 %v95
    %v179 = vunpack.c.l.b16 %v96
    %v180 = vunpack.c.l.b16 %v97
    %v181 = vunpack.c.l.b16 %v98
    %v182 = vunpack.c.l.b16 %v99
    %v183 = vunpack.c.l.b16 %v100
    %v184 = vunpack.c.l.b16 %v101
    %v185 = vunpack.c.l.b16 %v102
    %v186 = vunpack.c.l.b16 %v103
    %v187 = vunpack.c.l.b16 %v104
    %v188 = vunpack.c.l.b16 %v105
    %v189 = vunpack.c.l.b16 %v106
    %v190 = vunpack.c.l.b16 %v107
    %v191 = vunpack.c.l.b16 %v108
    %v192 = vunpack.c.l.b16 %v109
    %v193 = vunpack.c.l.b16 %v110
    %v194 = vunpack.c.l.b16 %v111
    %v195 = vunpack.c.l.b16 %v112
    %v196 = vunpack.c.l.b16 %v113
    %v197 = vunpack.c.l.b16 %v114
    %v198 = vunpack.c.l.b16 %v115
    %v199 = vunpack.c.l.b16 %v116
    %v200 = vpack.c.b16 %v163, %v162
    %v201 = vpack.c.b16 %v165, %v164
    %v202 = vpack.c.b16 %v167, %v166
    %v203 = vpack.c.b16 %v169, %v168
    %v204 = vpack.c.b16 %v171, %v170
    %v205 = vpack.c.b16 %v173, %v172
    %v206 = vpack.c.b16 %v175, %v174
    %v207 = vpack.c.b16 %v177, %v176
    %v208 = vpack.c.b16 %v179, %v178
    %v209 = vpack.c.b16 %v181, %v180
    %v210 = vpack.c.b16 %v183, %v182
    %v211 = vpack.c.b16 %v185, %v184
    %v212 = vpack.c.b16 %v187, %v186
    %v213 = vpack.c.b16 %v189, %v188
    %v214 = vpack.c.b16 %v191, %v190
    %v215 = vpack.c.b16 %v193, %v192
    %v216 = vpack.c.b16 %v195, %v194
    %v217 = vpack.c.b16 %v197, %v196
    %v218 = vpack.c.b16 %v199, %v198
    %vm237 = vcmask 359424
    %v239 = vsel %vm237, %v78, 0
    %vm241 = vcmask 1045504
    %v243 = vsel %vm241, %v218, 0
    %245 = vmatprep.subr.bf16.mxu0 0
    %246 = vmatpush1.bf16.msra.mxu0 %v200
    %247 = vmatprep.subr.bf16.mxu0 0
    %248 = vmatpush1.bf16.msra.mxu0 %v201
    %249 = vmatprep.subr.bf16.mxu0 0
    %250 = vmatpush1.bf16.msra.mxu0 %v202
    %251 = vmatprep.subr.bf16.mxu0 0
    %252 = vmatpush1.bf16.msra.mxu0 %v203
    %253 = vmatprep.subr.bf16.mxu0 0
    %254 = vmatpush1.bf16.msra.mxu0 %v204
    %255 = vmatprep.subr.bf16.mxu0 0
    %256 = vmatpush1.bf16.msra.mxu0 %v205
    %257 = vmatprep.subr.bf16.mxu0 0
    %258 = vmatpush1.bf16.msra.mxu0 %v206
    %259 = vmatprep.subr.bf16.mxu0 0
    %260 = vmatpush1.bf16.msra.mxu0 %v207
    %261 = vmatprep.subr.bf16.mxu0 0
    %262 = vmatpush1.bf16.msra.mxu0 %v208
    %263 = vmatprep.subr.bf16.mxu0 0
    %264 = vmatpush1.bf16.msra.mxu0 %v209
    %265 = vmatprep.subr.bf16.mxu0 0
    %266 = vmatpush1.bf16.msra.mxu0 %v210
    %267 = vmatprep.subr.bf16.mxu0 0
    %268 = vmatpush1.bf16.msra.mxu0 %v211
    %269 = vmatprep.subr.bf16.mxu0 0
    %270 = vmatpush1.bf16.msra.mxu0 %v212
    %271 = vmatprep.subr.bf16.mxu0 0
    %272 = vmatpush1.bf16.msra.mxu0 %v213
    %273 = vmatprep.subr.bf16.mxu0 0
    %274 = vmatpush1.bf16.msra.mxu0 %v214
    %275 = vmatprep.subr.bf16.mxu0 0
    %276 = vmatpush1.bf16.msra.mxu0 %v215
    %277 = vmatprep.mubr.bf16.mxu0 %v77
    %278 = vmatmul.mubr.bf16.gmra.mrb[0].mxu0 %v76
    %v279 = vpop.f32.mrb[0].mxu0
    %v280 = vadd.f32 %v122, %v279
    %v281 = vpop.f32.mrb[0].mxu0
    %v282 = vpop.f32.mrb[0].mxu0
    %v283 = vpop.f32.mrb[0].mxu0
    %284 = vdwg.mxu0
    %285 = vmatprep.subr.bf16.mxu0 0
    %286 = vmatpush1.bf16.msra.mxu0 %v216
    %287 = vmatprep.subr.bf16.mxu0 0
    %288 = vmatpush1.bf16.msra.mxu0 %v217
    %289 = vmatprep.subr.bf16.mxu0 0
    %290 = vmatpush1.bf16.msra.mxu0 %v243
    %291 = vmatprep.subr.bf16.mxu0 0
    %292 = vmatpush1.bf16.msra.mxu0 0
    %293 = vmatprep.subr.bf16.mxu0 0
    %294 = vmatpush1.bf16.msra.mxu0 0
    %295 = vmatprep.subr.bf16.mxu0 0
    %296 = vmatpush1.bf16.msra.mxu0 0
    %297 = vmatprep.subr.bf16.mxu0 0
    %298 = vmatpush1.bf16.msra.mxu0 0
    %299 = vmatprep.subr.bf16.mxu0 0
    %300 = vmatpush1.bf16.msra.mxu0 0
    %301 = vmatprep.subr.bf16.mxu0 0
    %302 = vmatpush1.bf16.msra.mxu0 0
    %303 = vmatprep.subr.bf16.mxu0 0
    %304 = vmatpush1.bf16.msra.mxu0 0
    %305 = vmatprep.subr.bf16.mxu0 0
    %306 = vmatpush1.bf16.msra.mxu0 0
    %307 = vmatprep.subr.bf16.mxu0 0
    %308 = vmatpush1.bf16.msra.mxu0 0
    %309 = vmatprep.subr.bf16.mxu0 0
    %310 = vmatpush1.bf16.msra.mxu0 0
    %311 = vmatprep.subr.bf16.mxu0 0
    %312 = vmatpush1.bf16.msra.mxu0 0
    %313 = vmatprep.subr.bf16.mxu0 0
    %314 = vmatpush1.bf16.msra.mxu0 0
    %315 = vmatprep.subr.bf16.mxu0 0
    %316 = vmatpush1.bf16.msra.mxu0 0
    %317 = vmatprep.mubr.bf16.mxu0 0
    %318 = vmatmul.mubr.bf16.gmra.mrb[0].mxu0 %v239
    %v319 = vpop.f32.mrb[0].mxu0
    %v320 = vadd.f32 %v280, %v319
    %v321 = vpop.f32.mrb[0].mxu0
    %v322 = vpop.f32.mrb[0].mxu0
    %v323 = vpop.f32.mrb[0].mxu0
    %324 = vdwg.mxu0
    %v325 = vmax.f32 %v320, 0.0
    %v326 = vld [vmem:[#allocation9] sm:$0x1]
    %v328 = vlaneseq
    %v329 = vshrl.u32 %v328, 7
    %v330 = vsub.s32 0, %v329
    %v331 = vrot.slane %v326, %v330
    %v333 = vmul.f32 %v325, %v331
    %vm334 = vcmask 64512
    %v335 = vsel %vm334, %v333, 0.0
    %336 = vadd.xlane.f32.xlu0 %v335
    %v337 = vpop.xlane.xlu0 %336
    %v338 = vld [vmem:[#allocation2] sm:$0x1]
    %v340 = vlaneseq
    %v341 = vshrl.u32 %v340, 7
    %v342 = vsub.s32 0, %v341
    %v343 = vrot.slane %v338, %v342
    %v345 = vadd.f32 %v337, %v343
    %v346 = vmax.f32 %v345, 0.0
    %v347 = vand.u32 2147483647, %v345
    %v348 = vsub.f32 0.0, %v347
    %v349 = vmul.f32 %v348, 1.442695
    %v350 = vpow.pop %v349
    %v351 = vadd.f32 %v350, 1.0
    %v352 = vlog2.pop %v351
    %v353 = vmul.f32 %v352, 0.6931472
    %v354 = vadd.f32 %v346, %v353
    %v355 = vlaneseq
    %v356 = vand.u32 %v355, 127
    %vm357 = vcmp.eq.s32.totalorder %v356, 0
    %v358 = vsub.f32 0.0, %v354
    %v359 = vsub.f32 %v345, %v354
    %361 = vset.pattern.permute.xlu0 0
    %362 = vperm.xlu0 %361, %v358
    %v363 = vpop.permute.xlu0 %362
    %366 = vset.pattern.permute.xlu0 0
    %367 = vperm.xlu0 %366, %v359
    %v368 = vpop.permute.xlu0 %367
    %v370 = vsel %vm357, %v363, %v368
    %vm371 = vcmask 15360
    %372 = vst.msk [vmem:[#allocation11] sm:$0xff] %vm371, %v370
    // Predicated region
    $region38: #{tpu_custom_call.1} parent=1 // pred_check
      _
    $region39: #{tpu_custom_call.1} parent=1 // pred_check_branch
      %374 = sbr.rel (0) target = $region41
    $region40: #{tpu_custom_call.1} parent=1 // pred_region
      %s376 = ssub.s32 128, 128
      %377 = vsyncadd [#allocation5], %s376
      %s379 = sshll.u32 [#allocation11], 4
      %s380 = int_to_ptr.vmem [resolvable:$true] %s379
      %382 = dma.vmem_to_hbm [thread:$0]  %s380, 128, %s5, [#allocation5]
    $region41: #{tpu_custom_call.1} parent=1 // pred_fallthru
      _
    // Predicated region
    $region42: #{tpu_custom_call.1} parent=1 // pred_check
      _
    $region43: #{tpu_custom_call.1} parent=1 // pred_check_branch
      %384 = sbr.rel (0) target = $region45
    $region44: #{tpu_custom_call.1} parent=1 // pred_region
      %385 = dma.done [#allocation5], 128
    $region45: #{tpu_custom_call.1} parent=1 // pred_fallthru
      _
    %386 = vsyncpa [#allocation4], 1
    %387 = vsyncpa [#allocation7], 1
    %388 = vsyncpa [#allocation10], 1
    %389 = vsyncpa [#allocation5], 1

</llo_original>
